<compile_context>
chip_gen: v5e
topology: v5e:2x2
jax: 0.10.0
libtpu: 0.0.40
codegen_flags: <defaults>
</compile_context>

<pallas_src>
import functools

import jax
import jax.numpy as jnp
from jax.experimental import pallas as pl
from jax.experimental.pallas import tpu as pltpu

_EPS = 1e-8
_MOMENTUM = 0.1
_LANE = 128
_MIB = 1024 * 1024


def _train_kernel(x_ref, rm_ref, rv_ref, out_ref, new_rm_ref, new_rv_ref):
    """One lane-dense feature tile; the full class axis is resident so the
    dim-0 (sublane) reduction stays inside the block.  Garbage lanes of a
    ragged final tile only produce garbage *per-lane* stats, which are masked
    on store and never feed any cross-lane op."""
    x = x_ref[...].astype(jnp.float32)                      # (N, T)
    n = x.shape[0]
    mean = jnp.mean(x, axis=0, keepdims=True)               # (1, T)
    diff = x - mean
    # torch.var(dim=0) is unbiased: divide by N-1 (NaN/Inf when N == 1, same as torch).
    var = jnp.sum(diff * diff, axis=0, keepdims=True) * (1.0 / (n - 1))
    # Hoist the divide: one exact reciprocal row, then N rows of multiplies.
    inv = 1.0 / (var + _EPS)                                # NOTE: var, not sqrt(var)
    out_ref[...] = (diff * inv).astype(out_ref.dtype)
    new_rm_ref[...] = (1.0 - _MOMENTUM) * rm_ref[...] + _MOMENTUM * mean
    new_rv_ref[...] = (1.0 - _MOMENTUM) * rv_ref[...] + _MOMENTUM * var


def _eval_kernel(x_ref, rm_ref, rv_ref, out_ref):
    scale = 1.0 / (rv_ref[...] + _EPS)                      # one (1, T) row
    x = x_ref[...].astype(jnp.float32)
    out_ref[...] = ((x - rm_ref[...]) * scale).astype(out_ref.dtype)


def _vmem_budget_bytes():
    """~75% of per-core VMEM (v5e/v6e: 128 MiB -> 96 MiB, v7x: 64 MiB -> 48 MiB).
    Falls back to a conservative 48 MiB if the query is unavailable."""
    cap = None
    try:
        cap = getattr(pltpu.get_tpu_info(), "vmem_capacity_bytes", None)
    except Exception:
        cap = None
    if not cap:
        cap = 64 * _MIB
    return (3 * int(cap)) // 4


def _derive_feat_tile(n_classes, feat_dim, in_itemsize, out_itemsize, budget):
    """Largest lane-multiple feature tile whose double-buffered x-in + out
    blocks fit the VMEM budget."""
    f_pad = pl.cdiv(feat_dim, _LANE) * _LANE
    bytes_per_col = 2 * n_classes * (in_itemsize + out_itemsize) + 32  # + stat rows
    tile = (budget // max(bytes_per_col, 1)) // _LANE * _LANE
    # TODO(synk): if even a 128-wide tile cannot hold the full class axis
    # (huge num_classes), switch to a class-chunked grid with scratch s1/s2
    # accumulators (init/finalize via pl.when) plus a normalize pass.
    tile = max(_LANE, min(tile, f_pad))
    # Prefer >= 2 feature tiles so the "parallel" grid axis can shard across
    # v7x's two TensorCores, but only when each half stays >= 512 lanes so
    # single-core chips (v5e/v6e) remain near the HBM roofline.
    half = pl.cdiv(pl.cdiv(f_pad, 2), _LANE) * _LANE
    if tile >= f_pad and half >= 4 * _LANE:
        tile = half
    return tile


@functools.partial(jax.jit, static_argnames=("training",))
def class_standardization_forward(class_feats, running_mean, running_var,
                                  *, training=True):
    """Functional ClassStandardization.forward.

    training=True  -> (result, new_running_mean, new_running_var)
    training=False -> result
    """
    n, f = class_feats.shape
    in_dt = class_feats.dtype
    in_b = class_feats.dtype.itemsize
    out_b = in_b

    # Running stats are tiny (F,) vectors: cast/reshape cost is negligible.
    rm = running_mean.astype(jnp.float32).reshape(1, f)
    rv = running_var.astype(jnp.float32).reshape(1, f)

    budget = _vmem_budget_bytes()
    feat_tile = _derive_feat_tile(n, f, in_b, out_b, budget)
    n_tiles = pl.cdiv(f, feat_tile)

    # Full class axis per block (block dim == array dim), lane-dense feat tile;
    # the last tile is ragged (masked load/store), no wrapper pad needed.
    x_spec = pl.BlockSpec((n, feat_tile), lambda j: (0, j))
    stat_spec = pl.BlockSpec((1, feat_tile), lambda j: (0, j))

    cparams = pltpu.CompilerParams(
        dimension_semantics=("parallel",),
        vmem_limit_bytes=int(budget),
    )

    if training:
        cost = pl.CostEstimate(
            flops=7 * n * f,
            transcendentals=0,
            bytes_accessed=n * f * (in_b + out_b) + 4 * 4 * f,
        )
        out, new_rm, new_rv = pl.pallas_call(
            _train_kernel,
            out_shape=(
                jax.ShapeDtypeStruct((n, f), in_dt),
                jax.ShapeDtypeStruct((1, f), jnp.float32),
                jax.ShapeDtypeStruct((1, f), jnp.float32),
            ),
            grid=(n_tiles,),
            in_specs=[x_spec, stat_spec, stat_spec],
            out_specs=(x_spec, stat_spec, stat_spec),
            compiler_params=cparams,
            cost_estimate=cost,
        )(class_feats, rm, rv)
        # TODO(synk): PyTorch mutates nn.Parameter buffers in place; here the
        # updated running stats are returned functionally instead.
        return out, new_rm[0], new_rv[0]
    else:
        cost = pl.CostEstimate(
            flops=2 * n * f,
            transcendentals=0,
            bytes_accessed=n * f * (in_b + out_b) + 2 * 4 * f,
        )
        out = pl.pallas_call(
            _eval_kernel,
            out_shape=jax.ShapeDtypeStruct((n, f), in_dt),
            grid=(n_tiles,),
            in_specs=[x_spec, stat_spec, stat_spec],
            out_specs=x_spec,
            compiler_params=cparams,
            cost_estimate=cost,
        )(class_feats, rm, rv)
        return out


if __name__ == "__main__":
    num_classes, feat_dim = 16, 48   # small, non-multiple-of-128 feat dim

    key = jax.random.PRNGKey(0)
    class_feats = jax.random.normal(key, (num_classes, feat_dim), jnp.float32)
    running_mean = jnp.zeros((feat_dim,), jnp.float32)
    running_var = jnp.ones((feat_dim,), jnp.float32)

    # ---- training mode ----
    out, new_rm, new_rv = class_standardization_forward(
        class_feats, running_mean, running_var, training=True)
    out = jax.block_until_ready(out)

    mean_ref = class_feats.mean(axis=0)
    var_ref = class_feats.var(axis=0, ddof=1)          # unbiased, like torch.var
    ref_out = (class_feats - mean_ref[None]) / (var_ref[None] + _EPS)
    ref_rm = (1.0 - _MOMENTUM) * running_mean + _MOMENTUM * mean_ref
    ref_rv = (1.0 - _MOMENTUM) * running_var + _MOMENTUM * var_ref

    assert out.shape == (num_classes, feat_dim)
    assert jnp.allclose(out, ref_out, atol=1e-5, rtol=1e-5), "train result mismatch"
    assert jnp.allclose(new_rm, ref_rm, atol=1e-6, rtol=1e-6), "running_mean mismatch"
    assert jnp.allclose(new_rv, ref_rv, atol=1e-6, rtol=1e-6), "running_var mismatch"

    # ---- eval mode (uses the updated running stats) ----
    out_eval = class_standardization_forward(
        class_feats, new_rm, new_rv, training=False)
    out_eval = jax.block_until_ready(out_eval)
    ref_eval = (class_feats - new_rm[None]) / (new_rv[None] + _EPS)
    assert jnp.allclose(out_eval, ref_eval, atol=1e-5, rtol=1e-5), "eval result mismatch"

    print("KERNEL_OK")
</pallas_src>

<mosaic_0001>
module attributes {stable_mosaic.version = 11 : i64} {
  func.func @_train_kernel(%arg0: i32, %arg1: memref<16x128xf32, #tpu.memory_space<vmem>>, %arg2: memref<1x128xf32, #tpu.memory_space<vmem>>, %arg3: memref<1x128xf32, #tpu.memory_space<vmem>>, %arg4: memref<16x128xf32, #tpu.memory_space<vmem>>, %arg5: memref<1x128xf32, #tpu.memory_space<vmem>>, %arg6: memref<1x128xf32, #tpu.memory_space<vmem>>) attributes {dimension_semantics = [#tpu.dimension_semantics<parallel>], iteration_bounds = array<i64: 1>, scalar_prefetch = 0 : i64, scratch_operands = 0 : i64, tpu.core_type = #tpu.core_type<tc>, window_params = [{transform_indices = @transform_0, window_bounds = array<i64: 16, 128>}, {transform_indices = @transform_1, window_bounds = array<i64: 1, 128>}, {transform_indices = @transform_2, window_bounds = array<i64: 1, 128>}, {transform_indices = @transform_3, window_bounds = array<i64: 16, 128>}, {transform_indices = @transform_4, window_bounds = array<i64: 1, 128>}, {transform_indices = @transform_5, window_bounds = array<i64: 1, 128>}]} {
    %c0 = arith.constant 0 : index
    %c0_0 = arith.constant 0 : index
    %0 = vector.load %arg1[%c0, %c0_0] : memref<16x128xf32, #tpu.memory_space<vmem>>, vector<16x128xf32>
    %cst = arith.constant dense<0.000000e+00> : vector<128xf32>
    %1 = vector.multi_reduction <add>, %0, %cst [0] : vector<16x128xf32> to vector<128xf32>
    %2 = vector.shape_cast %1 : vector<128xf32> to vector<1x128xf32>
    %cst_1 = arith.constant 1.600000e+01 : f32
    %3 = vector.broadcast %cst_1 : f32 to vector<1x128xf32>
    %4 = arith.divf %2, %3 : vector<1x128xf32>
    %5 = vector.broadcast %4 : vector<1x128xf32> to vector<16x128xf32>
    %6 = arith.subf %0, %5 : vector<16x128xf32>
    %7 = arith.mulf %6, %6 : vector<16x128xf32>
    %cst_2 = arith.constant dense<0.000000e+00> : vector<128xf32>
    %8 = vector.multi_reduction <add>, %7, %cst_2 [0] : vector<16x128xf32> to vector<128xf32>
    %9 = vector.shape_cast %8 : vector<128xf32> to vector<1x128xf32>
    %cst_3 = arith.constant 0.0666666701 : f32
    %10 = vector.broadcast %cst_3 : f32 to vector<1x128xf32>
    %11 = arith.mulf %9, %10 : vector<1x128xf32>
    %cst_4 = arith.constant 9.99999993E-9 : f32
    %12 = vector.broadcast %cst_4 : f32 to vector<1x128xf32>
    %13 = arith.addf %11, %12 : vector<1x128xf32>
    %cst_5 = arith.constant 1.000000e+00 : f32
    %14 = vector.broadcast %cst_5 : f32 to vector<1x128xf32>
    %15 = arith.divf %14, %13 : vector<1x128xf32>
    %16 = vector.broadcast %15 : vector<1x128xf32> to vector<16x128xf32>
    %17 = arith.mulf %6, %16 : vector<16x128xf32>
    %c0_6 = arith.constant 0 : index
    %c0_7 = arith.constant 0 : index
    %18 = vector.load %arg4[%c0_6, %c0_7] : memref<16x128xf32, #tpu.memory_space<vmem>>, vector<16x128xf32>
    tpu.vector_store %arg4[%c0_6, %c0_7], %17 {strides = array<i32>} : memref<16x128xf32, #tpu.memory_space<vmem>>, vector<16x128xf32>,
    %c0_8 = arith.constant 0 : index
    %c0_9 = arith.constant 0 : index
    %19 = vector.load %arg2[%c0_8, %c0_9] : memref<1x128xf32, #tpu.memory_space<vmem>>, vector<1x128xf32>
    %cst_10 = arith.constant 0.899999976 : f32
    %20 = vector.broadcast %cst_10 : f32 to vector<1x128xf32>
    %21 = arith.mulf %20, %19 : vector<1x128xf32>
    %cst_11 = arith.constant 1.000000e-01 : f32
    %22 = vector.broadcast %cst_11 : f32 to vector<1x128xf32>
    %23 = arith.mulf %22, %4 : vector<1x128xf32>
    %24 = arith.addf %21, %23 : vector<1x128xf32>
    %c0_12 = arith.constant 0 : index
    %c0_13 = arith.constant 0 : index
    %25 = vector.load %arg5[%c0_12, %c0_13] : memref<1x128xf32, #tpu.memory_space<vmem>>, vector<1x128xf32>
    tpu.vector_store %arg5[%c0_12, %c0_13], %24 {strides = array<i32>} : memref<1x128xf32, #tpu.memory_space<vmem>>, vector<1x128xf32>,
    %c0_14 = arith.constant 0 : index
    %c0_15 = arith.constant 0 : index
    %26 = vector.load %arg3[%c0_14, %c0_15] : memref<1x128xf32, #tpu.memory_space<vmem>>, vector<1x128xf32>
    %cst_16 = arith.constant 0.899999976 : f32
    %27 = vector.broadcast %cst_16 : f32 to vector<1x128xf32>
    %28 = arith.mulf %27, %26 : vector<1x128xf32>
    %cst_17 = arith.constant 1.000000e-01 : f32
    %29 = vector.broadcast %cst_17 : f32 to vector<1x128xf32>
    %30 = arith.mulf %29, %11 : vector<1x128xf32>
    %31 = arith.addf %28, %30 : vector<1x128xf32>
    %c0_18 = arith.constant 0 : index
    %c0_19 = arith.constant 0 : index
    %32 = vector.load %arg6[%c0_18, %c0_19] : memref<1x128xf32, #tpu.memory_space<vmem>>, vector<1x128xf32>
    tpu.vector_store %arg6[%c0_18, %c0_19], %31 {strides = array<i32>} : memref<1x128xf32, #tpu.memory_space<vmem>>, vector<1x128xf32>,
    return
  }
  func.func @transform_0(%arg0: i32) -> (i32, i32) {
    %c0_i32 = arith.constant 0 : i32
    %c0_i32_0 = arith.constant 0 : i32
    return %c0_i32, %arg0 : i32, i32
  }
  func.func @transform_1(%arg0: i32) -> (i32, i32) {
    %c0_i32 = arith.constant 0 : i32
    %c0_i32_0 = arith.constant 0 : i32
    return %c0_i32, %arg0 : i32, i32
  }
  func.func @transform_2(%arg0: i32) -> (i32, i32) {
    %c0_i32 = arith.constant 0 : i32
    %c0_i32_0 = arith.constant 0 : i32
    return %c0_i32, %arg0 : i32, i32
  }
  func.func @transform_3(%arg0: i32) -> (i32, i32) {
    %c0_i32 = arith.constant 0 : i32
    %c0_i32_0 = arith.constant 0 : i32
    return %c0_i32, %arg0 : i32, i32
  }
  func.func @transform_4(%arg0: i32) -> (i32, i32) {
    %c0_i32 = arith.constant 0 : i32
    %c0_i32_0 = arith.constant 0 : i32
    return %c0_i32, %arg0 : i32, i32
  }
  func.func @transform_5(%arg0: i32) -> (i32, i32) {
    %c0_i32 = arith.constant 0 : i32
    %c0_i32_0 = arith.constant 0 : i32
    return %c0_i32, %arg0 : i32, i32
  }
}

</mosaic_0001>

<llo_original>
// kernel: class_standardization_forward.1
$region0: #{class_standardization_forward.1}
  #allocation0 [shape = 'u32[]', space=smem, size = 0x4, offset = 0x4, fixed_abs, tag = 'smem constant byte address 0x4 - core index']
  #allocation1 [shape = 'u32[72,128]{1,0:T(1,128)}', space=vmem, size = 0x9000, scoped, tag = 'internal scratch']
  %s0 = inlined_call_operand.hbm [shape: f32[16,48], index: 0, kind: input, shape index: {}]
  %s1 = inlined_call_operand.vmem [shape: f32[1,48], index: 1, kind: input, shape index: {}]
  %s2 = inlined_call_operand.vmem [shape: f32[1,48], index: 2, kind: input, shape index: {}]
  %s3 = inlined_call_operand.hbm [shape: f32[16,48], index: 3, kind: output, shape index: {0}]
  %s4 = inlined_call_operand.hbm [shape: f32[1,48], index: 4, kind: output, shape index: {1}]
  %s5 = inlined_call_operand.hbm [shape: f32[1,48], index: 5, kind: output, shape index: {2}]
  %6 = xla_tuple %s3, %s4, %s5
  %s7 = sld [smem:[#allocation0]]
  $region42: #{class_standardization_forward.1} parent=0
    _
  %s9 = ssub.s32 1, %s7
  %s10 = scalar_select 0, %s9, %s7
  $region1: #{class_standardization_forward.1} parent=0
    #allocation2 [shape = 'u8[8192]{0}', space=vmem, size = 0x2000, scoped, tag = 'input window, operand 0, single buffered']
    #allocation3 [shape = 's32[1]{0}', space=sflag, size = 0x4, scoped, tag = 'scoped memory for class_standardization_forward.1']
    #allocation4 [shape = 's32[1]{0}', space=sflag, size = 0x4, scoped, tag = 'scoped memory for class_standardization_forward.1']
    #allocation5 [shape = 'u8[8192]{0}', space=vmem, size = 0x2000, scoped, tag = 'output window, operand 0, single buffered']
    #allocation6 [shape = 'u8[512]{0}', space=vmem, size = 0x400, scoped, tag = 'output window, operand 1, single buffered']
    #allocation7 [shape = 's32[1]{0}', space=sflag, size = 0x4, scoped, tag = 'scoped memory for class_standardization_forward.1']
    #allocation8 [shape = 'u8[512]{0}', space=vmem, size = 0x400, scoped, tag = 'output window, operand 2, single buffered']
    %11 = vsyncpa [#allocation3], 0
    %12 = vsyncpa [#allocation4], 0
    %13 = vsyncpa [#allocation7], 0
    // Predicated region
    $region2: #{class_standardization_forward.1} parent=1 // pred_check
      _
    $region3: #{class_standardization_forward.1} parent=1 // pred_check_branch
      %15 = sbr.rel (0) target = $region5
    $region4: #{class_standardization_forward.1} parent=1 // pred_region
      %17 = vsyncadd [#allocation3], 0
      %s18 = sshll.u32 %s0, 4
      %s19 = int_to_ptr.hbm [resolvable:$true] %s18
      %s20 = sshll.u32 [#allocation2], 4
      %s21 = int_to_ptr.vmem [resolvable:$true] %s20
      %26 = dma.hbm_to_vmem [thread:$0]  %s19, 256, %s21, [#allocation3], 128, 128, 8
    $region5: #{class_standardization_forward.1} parent=1 // pred_fallthru
      _
    // Predicated region
    $region6: #{class_standardization_forward.1} parent=1 // pred_check
      _
    $region7: #{class_standardization_forward.1} parent=1 // pred_check_branch
      %28 = sbr.rel (0) target = $region9
    $region8: #{class_standardization_forward.1} parent=1 // pred_region
      _
    $region9: #{class_standardization_forward.1} parent=1 // pred_fallthru
      _
    // Predicated region
    $region10: #{class_standardization_forward.1} parent=1 // pred_check
      _
    $region11: #{class_standardization_forward.1} parent=1 // pred_check_branch
      %30 = sbr.rel (0) target = $region13
    $region12: #{class_standardization_forward.1} parent=1 // pred_region
      _
    $region13: #{class_standardization_forward.1} parent=1 // pred_fallthru
      _
    // Predicated region
    $region14: #{class_standardization_forward.1} parent=1 // pred_check
      _
    $region15: #{class_standardization_forward.1} parent=1 // pred_check_branch
      %32 = sbr.rel (0) target = $region17
    $region16: #{class_standardization_forward.1} parent=1 // pred_region
      %34 = dma.done [#allocation3], 256
    $region17: #{class_standardization_forward.1} parent=1 // pred_fallthru
      _
    %v35 = vld [vmem:[#allocation2] sm:$0xff]
    %v36 = vld [vmem:[#allocation2 + $0x8] sm:$0xff]
    %v37 = vadd.f32 %v35, %v36
    %v38 = vrot.slane %v37, 4
    %v39 = vadd.f32 %v37, %v38
    %v40 = vrot.slane %v39, 2
    %v41 = vadd.f32 %v39, %v40
    %v42 = vrot.slane %v41, 1
    %v43 = vadd.f32 %v41, %v42
    %v44 = vrcp.pop 16.0
    %v45 = vmul.f32 16.0, %v44
    %v46 = vsub.f32 1.0, %v45
    %v47 = vmul.f32 %v44, %v46
    %v48 = vadd.f32 %v44, %v47
    %vm49 = vweird.f32 %v44
    %v50 = vsel %vm49, %v44, %v48
    %v51 = vmul.f32 %v43, %v50
    %v52 = vsub.f32 %v35, %v51
    %v53 = vsub.f32 %v36, %v51
    %v54 = vmul.f32 %v52, %v52
    %v55 = vmul.f32 %v53, %v53
    %v56 = vadd.f32 %v54, %v55
    %v57 = vrot.slane %v56, 4
    %v58 = vadd.f32 %v56, %v57
    %v59 = vrot.slane %v58, 2
    %v60 = vadd.f32 %v58, %v59
    %v61 = vrot.slane %v60, 1
    %v62 = vadd.f32 %v60, %v61
    %v63 = vmul.f32 %v62, 0.06666667
    %v64 = vadd.f32 %v63, 1e-08
    %v65 = vrcp.pop %v64
    %v66 = vmul.f32 %v64, %v65
    %v67 = vsub.f32 1.0, %v66
    %v68 = vmul.f32 %v65, %v67
    %v69 = vadd.f32 %v65, %v68
    %vm70 = vweird.f32 %v64
    %vm71 = vweird.f32 %v65
    %vm72 = vmor %vm70, %vm71
    %v73 = vsel %vm72, %v65, %v69
    %v74 = vand.u32 2147483647, %v64
    %vm75 = vcmp.eq.f32.partialorder %v74, 8.507059e+37
    %v76 = vand.u32 %v64, 2147483648
    %v77 = vor.u32 1.1754944e-38, %v76
    %v78 = vsel %vm75, %v77, %v73
    %v79 = vmul.f32 1.0, %v78
    %v80 = vmul.f32 %v52, %v79
    %v81 = vmul.f32 %v53, %v79
    %82 = vst [vmem:[#allocation5] sm:$0xff] %v80
    %83 = vst [vmem:[#allocation5 + $0x8] sm:$0xff] %v81
    %v84 = vld [vmem:[%s1] sm:$0x1]
    %v85 = vmul.f32 %v84, 0.9
    %v86 = vmul.f32 %v51, 0.1
    %v87 = vadd.f32 %v85, %v86
    %88 = vst [vmem:[#allocation6] sm:$0x1] %v87
    %v89 = vld [vmem:[%s2] sm:$0x1]
    %v90 = vmul.f32 %v89, 0.9
    %v91 = vmul.f32 %v63, 0.1
    %v92 = vadd.f32 %v90, %v91
    %93 = vst [vmem:[#allocation8] sm:$0x1] %v92
    // Predicated region
    $region18: #{class_standardization_forward.1} parent=1 // pred_check
      _
    $region19: #{class_standardization_forward.1} parent=1 // pred_check_branch
      %95 = sbr.rel (0) target = $region21
    $region20: #{class_standardization_forward.1} parent=1 // pred_region
      %97 = vsyncadd [#allocation4], 0
      %s98 = sshll.u32 [#allocation5], 4
      %s99 = int_to_ptr.vmem [resolvable:$true] %s98
      %s100 = sshll.u32 %s3, 4
      %s101 = int_to_ptr.hbm [resolvable:$true] %s100
      %106 = dma.vmem_to_hbm [thread:$0]  %s99, 256, %s101, [#allocation4], 128, 128, 8
    $region21: #{class_standardization_forward.1} parent=1 // pred_fallthru
      _
    // Predicated region
    $region22: #{class_standardization_forward.1} parent=1 // pred_check
      _
    $region23: #{class_standardization_forward.1} parent=1 // pred_check_branch
      %108 = sbr.rel (0) target = $region25
    $region24: #{class_standardization_forward.1} parent=1 // pred_region
      %110 = vsyncadd [#allocation7], 0
      %s112 = sshll.u32 [#allocation6], 4
      %s113 = int_to_ptr.vmem [resolvable:$true] %s112
      %s114 = sshll.u32 %s4, 4
      %s115 = int_to_ptr.hbm [resolvable:$true] %s114
      %117 = dma.vmem_to_hbm [thread:$0]  %s113, 16, %s115, [#allocation7]
    $region25: #{class_standardization_forward.1} parent=1 // pred_fallthru
      _
    // Predicated region
    $region26: #{class_standardization_forward.1} parent=1 // pred_check
      _
    $region27: #{class_standardization_forward.1} parent=1 // pred_check_branch
      %119 = sbr.rel (0) target = $region29
    $region28: #{class_standardization_forward.1} parent=1 // pred_region
      %121 = vsyncadd [#allocation7], 0
      %s123 = sshll.u32 [#allocation8], 4
      %s124 = int_to_ptr.vmem [resolvable:$true] %s123
      %s125 = sshll.u32 %s5, 4
      %s126 = int_to_ptr.hbm [resolvable:$true] %s125
      %128 = dma.vmem_to_hbm [thread:$0]  %s124, 16, %s126, [#allocation7]
    $region29: #{class_standardization_forward.1} parent=1 // pred_fallthru
      _
    // Predicated region
    $region30: #{class_standardization_forward.1} parent=1 // pred_check
      _
    $region31: #{class_standardization_forward.1} parent=1 // pred_check_branch
      %130 = sbr.rel (0) target = $region33
    $region32: #{class_standardization_forward.1} parent=1 // pred_region
      %132 = dma.done [#allocation4], 256
    $region33: #{class_standardization_forward.1} parent=1 // pred_fallthru
      _
    // Predicated region
    $region34: #{class_standardization_forward.1} parent=1 // pred_check
      _
    $region35: #{class_standardization_forward.1} parent=1 // pred_check_branch
      %134 = sbr.rel (0) target = $region37
    $region36: #{class_standardization_forward.1} parent=1 // pred_region
      %136 = dma.done [#allocation7], 16
    $region37: #{class_standardization_forward.1} parent=1 // pred_fallthru
      _
    // Predicated region
    $region38: #{class_standardization_forward.1} parent=1 // pred_check
      _
    $region39: #{class_standardization_forward.1} parent=1 // pred_check_branch
      %138 = sbr.rel (0) target = $region41
    $region40: #{class_standardization_forward.1} parent=1 // pred_region
      %140 = dma.done [#allocation7], 16
    $region41: #{class_standardization_forward.1} parent=1 // pred_fallthru
      _
    %141 = vsyncpa [#allocation3], 1
    %142 = vsyncpa [#allocation4], 1
    %143 = vsyncpa [#allocation7], 1

</llo_original>
